<compile_context>
chip_gen: v7x
topology: tpu7x:2x2x1
jax: 0.10.0
libtpu: 0.0.40
codegen_flags: <defaults>
</compile_context>

<pallas_src>
import math

import jax
import jax.numpy as jnp
from jax.experimental import pallas as pl
from jax.experimental.pallas import tpu as pltpu


# ----------------------------- Pallas kernel ---------------------------------
def dtn_read_kernel(x_ref, w_ref, o_ref):
    """One batch tile x one K tile.

    x_ref: (TB, 2, N)      -- fused x tile; x1 = x[:,0,:], x2 = x[:,1,:]
    w_ref: (I*J, Kt)       -- W flattened over (i,j); row index = i*J + j
    o_ref: (TB, Kt)
    """
    x1 = x_ref[:, 0, :]                                # (TB, I)
    x2 = x_ref[:, 1, :]                                # (TB, J)
    tb, i_dim = x1.shape
    j_dim = x2.shape[1]

    # VPU: per-batch outer product, flattened to match W.reshape(I*J, K):
    #   p[b, i*J + j] = x1[b, i] * x2[b, j]
    p = (x1[:, :, None] * x2[:, None, :]).reshape(tb, i_dim * j_dim)   # (TB, I*J)

    # MXU: single matmul with a full I*J-deep contraction, f32 accumulation.
    o_ref[...] = jnp.dot(
        p, w_ref[...], preferred_element_type=jnp.float32
    ).astype(o_ref.dtype)


# ------------------------------ wrapper ---------------------------------------
def deep_tensor_net_forward(x, W, *, tb=None, kt=None, vmem_limit_bytes=None):
    """Pallas equivalent of Deep_Tensor_Net.forward for float inputs.

    x : (B, 2, N) float      W : (I, J, K) float
    Returns (out, (W,)) to mirror the PyTorch module's return signature.
    """
    B, two, N = x.shape
    assert two == 2
    I, J, K = W.shape

    if tb is None:
        tb = min(B, 128)
    if kt is None:
        kt = K  # TODO(synk): pick kt < K on v7x when 2 * 4*I*J*K bytes nears VMEM.

    # TODO(synk): ragged batches would need pl.cdiv + masking; require divisibility here.
    assert B % tb == 0, "batch must be divisible by the batch tile"
    assert K % kt == 0, "K must be divisible by the K tile"
    assert tb == B or tb % 8 == 0, "batch tile must be 8-aligned (sublane) unless tb == B"

    x_f = x.astype(jnp.float32)
    W2 = W.reshape(I * J, K).astype(jnp.float32)       # row index = i*J + j

    cp_kwargs = dict(dimension_semantics=("parallel", "parallel"))
    if vmem_limit_bytes is not None:
        cp_kwargs["vmem_limit_bytes"] = vmem_limit_bytes

    out = pl.pallas_call(
        dtn_read_kernel,
        out_shape=jax.ShapeDtypeStruct((B, K), jnp.float32),
        grid_spec=pltpu.PrefetchScalarGridSpec(
            num_scalar_prefetch=0,
            grid=(B // tb, K // kt),
            in_specs=[
                pl.BlockSpec((tb, 2, N), lambda b, k: (b, 0, 0)),     # fused x tile
                pl.BlockSpec((I * J, kt), lambda b, k: (0, k)),       # W K-tile
            ],
            out_specs=pl.BlockSpec((tb, kt), lambda b, k: (b, k)),
        ),
        compiler_params=pltpu.CompilerParams(**cp_kwargs),
    )(x_f, W2)
    return out, (W,)


# ------------------------ parameter construction (glue) -----------------------
def build_net_weight(key, N, r, init_scale=1.0):
    """Deterministic synthetic factors ('FC' / Tucker-3) -> net_Weight W of shape (N,N,N).

    Mirrors initialize_Tensors: layer = init_scale**(1/depth) * randn(siz) / sqrt(siz[0]).
    """
    tensor_size_list = [(N, r), (N, r), (N, r), (r, r, r)]
    depth = len(tensor_size_list)
    s = init_scale ** (1.0 / depth)
    keys = jax.random.split(key, depth)
    factors = [
        s * jax.random.normal(k, siz, dtype=jnp.float32) / math.sqrt(siz[0])
        for k, siz in zip(keys, tensor_size_list)
    ]
    A, Bf, C, G = factors
    # tensor_prod(factor_list, einsum_str) for 'FC':
    W = jnp.einsum("ia,jb,kc,abc->ijk", A, Bf, C, G)
    return W, factors


def get_w_shape_cum(W):
    """JAX port of get_W_shape_cum (used only by the int64 index_select path)."""
    w_shape = list(W.shape[1:]) + [1]
    w_shape.reverse()
    p = 1
    cum = []
    for n in w_shape:
        p = p * n
        cum.append(p)
    cum.reverse()
    return jnp.asarray(cum, dtype=jnp.float32)


# ----------------------------------- main --------------------------------------
if __name__ == "__main__":
    key = jax.random.PRNGKey(0)
    k_w, k_x = jax.random.split(key)

    N, r, B = 16, 8, 16

    W, _factors = build_net_weight(k_w, N, r, init_scale=1.0)
    _ = get_w_shape_cum(W)  # kept for parity with module __init__

    # x: (batch, 2, N) float32 -> the "continuous" input path of read_from_Tensor
    x = jax.random.normal(k_x, (B, 2, N), dtype=jnp.float32)

    out, (W_ret,) = deep_tensor_net_forward(x, W)
    out = jax.block_until_ready(out)

    # reference check against the exact PyTorch einsum semantics
    ref = jnp.einsum("ijk,bi,bj->bk", W, x[:, 0, :], x[:, 1, :])
    assert out.shape == (B, N)
    assert jnp.allclose(out, ref, atol=1e-4, rtol=1e-4), "mismatch vs reference einsum"

    print("KERNEL_OK")
</pallas_src>

<mosaic_0001>
module attributes {stable_mosaic.version = 11 : i64} {
  func.func @dtn_read_kernel(%arg0: i32, %arg1: i32, %arg2: memref<16x2x16xf32, #tpu.memory_space<vmem>>, %arg3: memref<256x16xf32, #tpu.memory_space<vmem>>, %arg4: memref<16x16xf32, #tpu.memory_space<vmem>>) attributes {dimension_semantics = [#tpu.dimension_semantics<parallel>, #tpu.dimension_semantics<parallel>], iteration_bounds = array<i64: 1, 1>, scalar_prefetch = 0 : i64, scratch_operands = 0 : i64, tpu.core_type = #tpu.core_type<tc>, window_params = [{transform_indices = @transform_0, window_bounds = array<i64: 16, 2, 16>}, {transform_indices = @transform_1, window_bounds = array<i64: 256, 16>}, {transform_indices = @transform_2, window_bounds = array<i64: 16, 16>}]} {
    %c0 = arith.constant 0 : index
    %c0_0 = arith.constant 0 : index
    %c0_1 = arith.constant 0 : index
    %0 = vector.load %arg2[%c0, %c0_0, %c0_1] : memref<16x2x16xf32, #tpu.memory_space<vmem>>, vector<16x1x16xf32>
    %1 = vector.shape_cast %0 : vector<16x1x16xf32> to vector<16x16xf32>
    %c0_2 = arith.constant 0 : index
    %c1 = arith.constant 1 : index
    %c0_3 = arith.constant 0 : index
    %2 = vector.load %arg2[%c0_2, %c1, %c0_3] : memref<16x2x16xf32, #tpu.memory_space<vmem>>, vector<16x1x16xf32>
    %3 = vector.shape_cast %2 : vector<16x1x16xf32> to vector<16x16xf32>
    %4 = vector.shape_cast %1 : vector<16x16xf32> to vector<16x16x1xf32>
    %5 = vector.shape_cast %3 : vector<16x16xf32> to vector<16x1x16xf32>
    %6 = vector.broadcast %4 : vector<16x16x1xf32> to vector<16x16x16xf32>
    %7 = vector.broadcast %5 : vector<16x1x16xf32> to vector<16x16x16xf32>
    %8 = arith.mulf %6, %7 : vector<16x16x16xf32>
    %9 = vector.shape_cast %8 : vector<16x16x16xf32> to vector<16x256xf32>
    %c0_4 = arith.constant 0 : index
    %c0_5 = arith.constant 0 : index
    %10 = vector.load %arg3[%c0_4, %c0_5] : memref<256x16xf32, #tpu.memory_space<vmem>>, vector<256x16xf32>
    %cst = arith.constant dense<0.000000e+00> : vector<16x16xf32>
    %11 = tpu.matmul %9, %10, %cst {dimension_numbers = #tpu.dot_dimension_numbers<[1], [0], [0], [1], [0, 0, 1, 1], [], []>} : vector<16x256xf32>, vector<256x16xf32>, vector<16x16xf32> -> vector<16x16xf32>
    %c0_6 = arith.constant 0 : index
    %c0_7 = arith.constant 0 : index
    %12 = vector.load %arg4[%c0_6, %c0_7] : memref<16x16xf32, #tpu.memory_space<vmem>>, vector<16x16xf32>
    tpu.vector_store %arg4[%c0_6, %c0_7], %11 {strides = array<i32>} : memref<16x16xf32, #tpu.memory_space<vmem>>, vector<16x16xf32>,
    return
  }
  func.func @transform_0(%arg0: i32, %arg1: i32) -> (i32, i32, i32) {
    %c0_i32 = arith.constant 0 : i32
    %c0_i32_0 = arith.constant 0 : i32
    %c0_i32_1 = arith.constant 0 : i32
    return %arg0, %c0_i32, %c0_i32_0 : i32, i32, i32
  }
  func.func @transform_1(%arg0: i32, %arg1: i32) -> (i32, i32) {
    %c0_i32 = arith.constant 0 : i32
    %c0_i32_0 = arith.constant 0 : i32
    return %c0_i32, %arg1 : i32, i32
  }
  func.func @transform_2(%arg0: i32, %arg1: i32) -> (i32, i32) {
    %c0_i32 = arith.constant 0 : i32
    return %arg0, %arg1 : i32, i32
  }
}

</mosaic_0001>

<llo_original>
// kernel: tpu_custom_call.1
$region0: #{tpu_custom_call.1}
  #allocation0 [shape = 'u32[]', space=smem, size = 0x4, offset = 0x4, fixed_abs, tag = 'smem constant byte address 0x4 - core index']
  #allocation1 [shape = 'u32[144,128]{1,0:T(1,128)}', space=vmem, size = 0x12000, scoped, tag = 'internal scratch']
  %s0 = inlined_call_operand.vmem [shape: f32[16,2,16], index: 0, kind: input, shape index: {}]
  %s1 = inlined_call_operand.vmem [shape: f32[256,16], index: 1, kind: input, shape index: {}]
  %s2 = inlined_call_operand.hbm [shape: f32[16,16], index: 2, kind: output, shape index: {}]
  %s3 = sld [smem:[#allocation0]]
  $region18: #{tpu_custom_call.1} parent=0
    _
  %s5 = ssub.s32 1, %s3
  %s6 = scalar_select 0, %s5, %s3
  $region1: #{tpu_custom_call.1} parent=0
    #allocation2 [shape = 'u8[8192]{0}', space=vmem, size = 0x2000, scoped, tag = 'output window, operand 0, single buffered']
    #allocation3 [shape = 's32[1]{0}', space=sflag, size = 0x4, scoped, tag = 'scoped memory for tpu_custom_call.1']
    %7 = vsyncpa [#allocation3], 0
    // Predicated region
    $region2: #{tpu_custom_call.1} parent=1 // pred_check
      _
    $region3: #{tpu_custom_call.1} parent=1 // pred_check_branch
      %9 = sbr.rel (0) target = $region5
    $region4: #{tpu_custom_call.1} parent=1 // pred_region
      _
    $region5: #{tpu_custom_call.1} parent=1 // pred_fallthru
      _
    // Predicated region
    $region6: #{tpu_custom_call.1} parent=1 // pred_check
      _
    $region7: #{tpu_custom_call.1} parent=1 // pred_check_branch
      %11 = sbr.rel (0) target = $region9
    $region8: #{tpu_custom_call.1} parent=1 // pred_region
      _
    $region9: #{tpu_custom_call.1} parent=1 // pred_fallthru
      _
    %v12 = vld [vmem:[%s0] sm:$0x1]
    %v13 = vld [vmem:[%s0 + $0x2] sm:$0x1]
    %v14 = vld [vmem:[%s0 + $0x4] sm:$0x1]
    %v15 = vld [vmem:[%s0 + $0x6] sm:$0x1]
    %v16 = vld [vmem:[%s0 + $0x8] sm:$0x1]
    %v17 = vld [vmem:[%s0 + $0xa] sm:$0x1]
    %v18 = vld [vmem:[%s0 + $0xc] sm:$0x1]
    %v19 = vld [vmem:[%s0 + $0xe] sm:$0x1]
    %v20 = vld [vmem:[%s0 + $0x10] sm:$0x1]
    %v21 = vld [vmem:[%s0 + $0x12] sm:$0x1]
    %v22 = vld [vmem:[%s0 + $0x14] sm:$0x1]
    %v23 = vld [vmem:[%s0 + $0x16] sm:$0x1]
    %v24 = vld [vmem:[%s0 + $0x18] sm:$0x1]
    %v25 = vld [vmem:[%s0 + $0x1a] sm:$0x1]
    %v26 = vld [vmem:[%s0 + $0x1c] sm:$0x1]
    %v27 = vld [vmem:[%s0 + $0x1e] sm:$0x1]
    %v28 = vld [vmem:[%s0 + $0x1] sm:$0x1]
    %v29 = vld [vmem:[%s0 + $0x3] sm:$0x1]
    %v30 = vld [vmem:[%s0 + $0x5] sm:$0x1]
    %v31 = vld [vmem:[%s0 + $0x7] sm:$0x1]
    %v32 = vld [vmem:[%s0 + $0x9] sm:$0x1]
    %v33 = vld [vmem:[%s0 + $0xb] sm:$0x1]
    %v34 = vld [vmem:[%s0 + $0xd] sm:$0x1]
    %v35 = vld [vmem:[%s0 + $0xf] sm:$0x1]
    %v36 = vld [vmem:[%s0 + $0x11] sm:$0x1]
    %v37 = vld [vmem:[%s0 + $0x13] sm:$0x1]
    %v38 = vld [vmem:[%s0 + $0x15] sm:$0x1]
    %v39 = vld [vmem:[%s0 + $0x17] sm:$0x1]
    %v40 = vld [vmem:[%s0 + $0x19] sm:$0x1]
    %v41 = vld [vmem:[%s0 + $0x1b] sm:$0x1]
    %v42 = vld [vmem:[%s0 + $0x1d] sm:$0x1]
    %v43 = vld [vmem:[%s0 + $0x1f] sm:$0x1]
    %v44 = vlaneseq
    %v45 = vshrl.u32 %v44, 7
    %v46 = vsub.s32 0, %v45
    %v47 = vrot.slane %v12, %v46
    %49 = vbcast.lane.b32.xlu0 %v47, 256
    %v50 = vpop.permute.xlu0 %49
    %s52 = sor.u32 256, 8
    %53 = vbcast.lane.b32.xlu0 %v47, %s52
    %v54 = vpop.permute.xlu0 %53
    %v55 = vlaneseq
    %v56 = vshrl.u32 %v55, 7
    %v57 = vsub.s32 0, %v56
    %v58 = vrot.slane %v13, %v57
    %60 = vbcast.lane.b32.xlu0 %v58, 256
    %v61 = vpop.permute.xlu0 %60
    %s63 = sor.u32 256, 8
    %64 = vbcast.lane.b32.xlu0 %v58, %s63
    %v65 = vpop.permute.xlu0 %64
    %v66 = vlaneseq
    %v67 = vshrl.u32 %v66, 7
    %v68 = vsub.s32 0, %v67
    %v69 = vrot.slane %v14, %v68
    %71 = vbcast.lane.b32.xlu0 %v69, 256
    %v72 = vpop.permute.xlu0 %71
    %s74 = sor.u32 256, 8
    %75 = vbcast.lane.b32.xlu0 %v69, %s74
    %v76 = vpop.permute.xlu0 %75
    %v77 = vlaneseq
    %v78 = vshrl.u32 %v77, 7
    %v79 = vsub.s32 0, %v78
    %v80 = vrot.slane %v15, %v79
    %82 = vbcast.lane.b32.xlu0 %v80, 256
    %v83 = vpop.permute.xlu0 %82
    %s85 = sor.u32 256, 8
    %86 = vbcast.lane.b32.xlu0 %v80, %s85
    %v87 = vpop.permute.xlu0 %86
    %v88 = vlaneseq
    %v89 = vshrl.u32 %v88, 7
    %v90 = vsub.s32 0, %v89
    %v91 = vrot.slane %v16, %v90
    %93 = vbcast.lane.b32.xlu0 %v91, 256
    %v94 = vpop.permute.xlu0 %93
    %s96 = sor.u32 256, 8
    %97 = vbcast.lane.b32.xlu0 %v91, %s96
    %v98 = vpop.permute.xlu0 %97
    %v99 = vlaneseq
    %v100 = vshrl.u32 %v99, 7
    %v101 = vsub.s32 0, %v100
    %v102 = vrot.slane %v17, %v101
    %104 = vbcast.lane.b32.xlu0 %v102, 256
    %v105 = vpop.permute.xlu0 %104
    %s107 = sor.u32 256, 8
    %108 = vbcast.lane.b32.xlu0 %v102, %s107
    %v109 = vpop.permute.xlu0 %108
    %v110 = vlaneseq
    %v111 = vshrl.u32 %v110, 7
    %v112 = vsub.s32 0, %v111
    %v113 = vrot.slane %v18, %v112
    %115 = vbcast.lane.b32.xlu0 %v113, 256
    %v116 = vpop.permute.xlu0 %115
    %s118 = sor.u32 256, 8
    %119 = vbcast.lane.b32.xlu0 %v113, %s118
    %v120 = vpop.permute.xlu0 %119
    %v121 = vlaneseq
    %v122 = vshrl.u32 %v121, 7
    %v123 = vsub.s32 0, %v122
    %v124 = vrot.slane %v19, %v123
    %126 = vbcast.lane.b32.xlu0 %v124, 256
    %v127 = vpop.permute.xlu0 %126
    %s129 = sor.u32 256, 8
    %130 = vbcast.lane.b32.xlu0 %v124, %s129
    %v131 = vpop.permute.xlu0 %130
    %v132 = vlaneseq
    %v133 = vshrl.u32 %v132, 7
    %v134 = vsub.s32 0, %v133
    %v135 = vrot.slane %v20, %v134
    %137 = vbcast.lane.b32.xlu0 %v135, 256
    %v138 = vpop.permute.xlu0 %137
    %s140 = sor.u32 256, 8
    %141 = vbcast.lane.b32.xlu0 %v135, %s140
    %v142 = vpop.permute.xlu0 %141
    %v143 = vlaneseq
    %v144 = vshrl.u32 %v143, 7
    %v145 = vsub.s32 0, %v144
    %v146 = vrot.slane %v21, %v145
    %148 = vbcast.lane.b32.xlu0 %v146, 256
    %v149 = vpop.permute.xlu0 %148
    %s151 = sor.u32 256, 8
    %152 = vbcast.lane.b32.xlu0 %v146, %s151
    %v153 = vpop.permute.xlu0 %152
    %v154 = vlaneseq
    %v155 = vshrl.u32 %v154, 7
    %v156 = vsub.s32 0, %v155
    %v157 = vrot.slane %v22, %v156
    %159 = vbcast.lane.b32.xlu0 %v157, 256
    %v160 = vpop.permute.xlu0 %159
    %s162 = sor.u32 256, 8
    %163 = vbcast.lane.b32.xlu0 %v157, %s162
    %v164 = vpop.permute.xlu0 %163
    %v165 = vlaneseq
    %v166 = vshrl.u32 %v165, 7
    %v167 = vsub.s32 0, %v166
    %v168 = vrot.slane %v23, %v167
    %170 = vbcast.lane.b32.xlu0 %v168, 256
    %v171 = vpop.permute.xlu0 %170
    %s173 = sor.u32 256, 8
    %174 = vbcast.lane.b32.xlu0 %v168, %s173
    %v175 = vpop.permute.xlu0 %174
    %v176 = vlaneseq
    %v177 = vshrl.u32 %v176, 7
    %v178 = vsub.s32 0, %v177
    %v179 = vrot.slane %v24, %v178
    %181 = vbcast.lane.b32.xlu0 %v179, 256
    %v182 = vpop.permute.xlu0 %181
    %s184 = sor.u32 256, 8
    %185 = vbcast.lane.b32.xlu0 %v179, %s184
    %v186 = vpop.permute.xlu0 %185
    %v187 = vlaneseq
    %v188 = vshrl.u32 %v187, 7
    %v189 = vsub.s32 0, %v188
    %v190 = vrot.slane %v25, %v189
    %192 = vbcast.lane.b32.xlu0 %v190, 256
    %v193 = vpop.permute.xlu0 %192
    %s195 = sor.u32 256, 8
    %196 = vbcast.lane.b32.xlu0 %v190, %s195
    %v197 = vpop.permute.xlu0 %196
    %v198 = vlaneseq
    %v199 = vshrl.u32 %v198, 7
    %v200 = vsub.s32 0, %v199
    %v201 = vrot.slane %v26, %v200
    %203 = vbcast.lane.b32.xlu0 %v201, 256
    %v204 = vpop.permute.xlu0 %203
    %s206 = sor.u32 256, 8
    %207 = vbcast.lane.b32.xlu0 %v201, %s206
    %v208 = vpop.permute.xlu0 %207
    %v209 = vlaneseq
    %v210 = vshrl.u32 %v209, 7
    %v211 = vsub.s32 0, %v210
    %v212 = vrot.slane %v27, %v211
    %214 = vbcast.lane.b32.xlu0 %v212, 256
    %v215 = vpop.permute.xlu0 %214
    %s217 = sor.u32 256, 8
    %218 = vbcast.lane.b32.xlu0 %v212, %s217
    %v219 = vpop.permute.xlu0 %218
    %v220 = vlaneseq
    %v221 = vshrl.u32 %v220, 7
    %v222 = vsub.s32 0, %v221
    %v223 = vrot.slane %v28, %v222
    %v224 = vlaneseq
    %v225 = vshrl.u32 %v224, 7
    %v226 = vsub.s32 0, %v225
    %v227 = vrot.slane %v29, %v226
    %v228 = vlaneseq
    %v229 = vshrl.u32 %v228, 7
    %v230 = vsub.s32 0, %v229
    %v231 = vrot.slane %v30, %v230
    %v232 = vlaneseq
    %v233 = vshrl.u32 %v232, 7
    %v234 = vsub.s32 0, %v233
    %v235 = vrot.slane %v31, %v234
    %v236 = vlaneseq
    %v237 = vshrl.u32 %v236, 7
    %v238 = vsub.s32 0, %v237
    %v239 = vrot.slane %v32, %v238
    %v240 = vlaneseq
    %v241 = vshrl.u32 %v240, 7
    %v242 = vsub.s32 0, %v241
    %v243 = vrot.slane %v33, %v242
    %v244 = vlaneseq
    %v245 = vshrl.u32 %v244, 7
    %v246 = vsub.s32 0, %v245
    %v247 = vrot.slane %v34, %v246
    %v248 = vlaneseq
    %v249 = vshrl.u32 %v248, 7
    %v250 = vsub.s32 0, %v249
    %v251 = vrot.slane %v35, %v250
    %v252 = vlaneseq
    %v253 = vshrl.u32 %v252, 7
    %v254 = vsub.s32 0, %v253
    %v255 = vrot.slane %v36, %v254
    %v256 = vlaneseq
    %v257 = vshrl.u32 %v256, 7
    %v258 = vsub.s32 0, %v257
    %v259 = vrot.slane %v37, %v258
    %v260 = vlaneseq
    %v261 = vshrl.u32 %v260, 7
    %v262 = vsub.s32 0, %v261
    %v263 = vrot.slane %v38, %v262
    %v264 = vlaneseq
    %v265 = vshrl.u32 %v264, 7
    %v266 = vsub.s32 0, %v265
    %v267 = vrot.slane %v39, %v266
    %v268 = vlaneseq
    %v269 = vshrl.u32 %v268, 7
    %v270 = vsub.s32 0, %v269
    %v271 = vrot.slane %v40, %v270
    %v272 = vlaneseq
    %v273 = vshrl.u32 %v272, 7
    %v274 = vsub.s32 0, %v273
    %v275 = vrot.slane %v41, %v274
    %v276 = vlaneseq
    %v277 = vshrl.u32 %v276, 7
    %v278 = vsub.s32 0, %v277
    %v279 = vrot.slane %v42, %v278
    %v280 = vlaneseq
    %v281 = vshrl.u32 %v280, 7
    %v282 = vsub.s32 0, %v281
    %v283 = vrot.slane %v43, %v282
    %v284 = vmul.f32 %v50, %v223
    %v285 = vmul.f32 %v54, %v223
    %v286 = vmul.f32 %v61, %v227
    %v287 = vmul.f32 %v65, %v227
    %v288 = vmul.f32 %v72, %v231
    %v289 = vmul.f32 %v76, %v231
    %v290 = vmul.f32 %v83, %v235
    %v291 = vmul.f32 %v87, %v235
    %v292 = vmul.f32 %v94, %v239
    %v293 = vmul.f32 %v98, %v239
    %v294 = vmul.f32 %v105, %v243
    %v295 = vmul.f32 %v109, %v243
    %v296 = vmul.f32 %v116, %v247
    %v297 = vmul.f32 %v120, %v247
    %v298 = vmul.f32 %v127, %v251
    %v299 = vmul.f32 %v131, %v251
    %v300 = vmul.f32 %v138, %v255
    %v301 = vmul.f32 %v142, %v255
    %v302 = vmul.f32 %v149, %v259
    %v303 = vmul.f32 %v153, %v259
    %v304 = vmul.f32 %v160, %v263
    %v305 = vmul.f32 %v164, %v263
    %v306 = vmul.f32 %v171, %v267
    %v307 = vmul.f32 %v175, %v267
    %v308 = vmul.f32 %v182, %v271
    %v309 = vmul.f32 %v186, %v271
    %v310 = vmul.f32 %v193, %v275
    %v311 = vmul.f32 %v197, %v275
    %v312 = vmul.f32 %v204, %v279
    %v313 = vmul.f32 %v208, %v279
    %v314 = vmul.f32 %v215, %v283
    %v315 = vmul.f32 %v219, %v283
    %v316 = vcombine.low %v284, %v288
    %v317 = vcombine.high %v284, %v288
    %v319 = vunpack.c.l.s4 1983009808
    %v320 = vunpack.c.0.s8 %v319
    %v321 = vlaneseq
    %v322 = vshrl.u32 %v321, 7
    %v323 = vsub.s32 %v320, %v322
    %v324 = vrot.slane %v316, %v323
    %v326 = vunpack.c.l.s4 1983009808
    %v327 = vunpack.c.0.s8 %v326
    %v328 = vlaneseq
    %v329 = vshrl.u32 %v328, 7
    %v330 = vsub.s32 %v327, %v329
    %v331 = vrot.slane %v317, %v330
    %v332 = vcombine.low %v286, %v290
    %v333 = vcombine.high %v286, %v290
    %v335 = vunpack.c.l.s4 1983009808
    %v336 = vunpack.c.0.s8 %v335
    %v337 = vlaneseq
    %v338 = vshrl.u32 %v337, 7
    %v339 = vsub.s32 %v336, %v338
    %v340 = vrot.slane %v332, %v339
    %v342 = vunpack.c.l.s4 1983009808
    %v343 = vunpack.c.0.s8 %v342
    %v344 = vlaneseq
    %v345 = vshrl.u32 %v344, 7
    %v346 = vsub.s32 %v343, %v345
    %v347 = vrot.slane %v333, %v346
    %v348 = vcombine.low %v292, %v296
    %v349 = vcombine.high %v292, %v296
    %v351 = vunpack.c.l.s4 1983009808
    %v352 = vunpack.c.0.s8 %v351
    %v353 = vlaneseq
    %v354 = vshrl.u32 %v353, 7
    %v355 = vsub.s32 %v352, %v354
    %v356 = vrot.slane %v348, %v355
    %v358 = vunpack.c.l.s4 1983009808
    %v359 = vunpack.c.0.s8 %v358
    %v360 = vlaneseq
    %v361 = vshrl.u32 %v360, 7
    %v362 = vsub.s32 %v359, %v361
    %v363 = vrot.slane %v349, %v362
    %v364 = vcombine.low %v294, %v298
    %v365 = vcombine.high %v294, %v298
    %v367 = vunpack.c.l.s4 1983009808
    %v368 = vunpack.c.0.s8 %v367
    %v369 = vlaneseq
    %v370 = vshrl.u32 %v369, 7
    %v371 = vsub.s32 %v368, %v370
    %v372 = vrot.slane %v364, %v371
    %v374 = vunpack.c.l.s4 1983009808
    %v375 = vunpack.c.0.s8 %v374
    %v376 = vlaneseq
    %v377 = vshrl.u32 %v376, 7
    %v378 = vsub.s32 %v375, %v377
    %v379 = vrot.slane %v365, %v378
    %v380 = vcombine.low %v324, %v340
    %v381 = vcombine.high %v324, %v340
    %v383 = vunpack.c.l.s4 1934713408
    %v384 = vunpack.c.0.s8 %v383
    %v385 = vlaneseq
    %v386 = vshrl.u32 %v385, 7
    %v387 = vsub.s32 %v384, %v386
    %v388 = vrot.slane %v380, %v387
    %v390 = vunpack.c.l.s4 1934713408
    %v391 = vunpack.c.0.s8 %v390
    %v392 = vlaneseq
    %v393 = vshrl.u32 %v392, 7
    %v394 = vsub.s32 %v391, %v393
    %v395 = vrot.slane %v381, %v394
    %v396 = vcombine.low %v331, %v347
    %v397 = vcombine.high %v331, %v347
    %v399 = vunpack.c.l.s4 1934713408
    %v400 = vunpack.c.0.s8 %v399
    %v401 = vlaneseq
    %v402 = vshrl.u32 %v401, 7
    %v403 = vsub.s32 %v400, %v402
    %v404 = vrot.slane %v396, %v403
    %v406 = vunpack.c.l.s4 1934713408
    %v407 = vunpack.c.0.s8 %v406
    %v408 = vlaneseq
    %v409 = vshrl.u32 %v408, 7
    %v410 = vsub.s32 %v407, %v409
    %v411 = vrot.slane %v397, %v410
    %v412 = vcombine.low %v356, %v372
    %v413 = vcombine.high %v356, %v372
    %v415 = vunpack.c.l.s4 1934713408
    %v416 = vunpack.c.0.s8 %v415
    %v417 = vlaneseq
    %v418 = vshrl.u32 %v417, 7
    %v419 = vsub.s32 %v416, %v418
    %v420 = vrot.slane %v412, %v419
    %v422 = vunpack.c.l.s4 1934713408
    %v423 = vunpack.c.0.s8 %v422
    %v424 = vlaneseq
    %v425 = vshrl.u32 %v424, 7
    %v426 = vsub.s32 %v423, %v425
    %v427 = vrot.slane %v413, %v426
    %v428 = vcombine.low %v363, %v379
    %v429 = vcombine.high %v363, %v379
    %v431 = vunpack.c.l.s4 1934713408
    %v432 = vunpack.c.0.s8 %v431
    %v433 = vlaneseq
    %v434 = vshrl.u32 %v433, 7
    %v435 = vsub.s32 %v432, %v434
    %v436 = vrot.slane %v428, %v435
    %v438 = vunpack.c.l.s4 1934713408
    %v439 = vunpack.c.0.s8 %v438
    %v440 = vlaneseq
    %v441 = vshrl.u32 %v440, 7
    %v442 = vsub.s32 %v439, %v441
    %v443 = vrot.slane %v429, %v442
    %v444 = vcombine.low %v388, %v420
    %v445 = vcombine.high %v388, %v420
    %v446 = vcombine.low %v395, %v427
    %v447 = vcombine.high %v395, %v427
    %v448 = vcombine.low %v404, %v436
    %v449 = vcombine.high %v404, %v436
    %v450 = vcombine.low %v411, %v443
    %v451 = vcombine.high %v411, %v443
    %v452 = vcombine.low %v300, %v304
    %v453 = vcombine.high %v300, %v304
    %v455 = vunpack.c.l.s4 1983009808
    %v456 = vunpack.c.0.s8 %v455
    %v457 = vlaneseq
    %v458 = vshrl.u32 %v457, 7
    %v459 = vsub.s32 %v456, %v458
    %v460 = vrot.slane %v452, %v459
    %v462 = vunpack.c.l.s4 1983009808
    %v463 = vunpack.c.0.s8 %v462
    %v464 = vlaneseq
    %v465 = vshrl.u32 %v464, 7
    %v466 = vsub.s32 %v463, %v465
    %v467 = vrot.slane %v453, %v466
    %v468 = vcombine.low %v302, %v306
    %v469 = vcombine.high %v302, %v306
    %v471 = vunpack.c.l.s4 1983009808
    %v472 = vunpack.c.0.s8 %v471
    %v473 = vlaneseq
    %v474 = vshrl.u32 %v473, 7
    %v475 = vsub.s32 %v472, %v474
    %v476 = vrot.slane %v468, %v475
    %v478 = vunpack.c.l.s4 1983009808
    %v479 = vunpack.c.0.s8 %v478
    %v480 = vlaneseq
    %v481 = vshrl.u32 %v480, 7
    %v482 = vsub.s32 %v479, %v481
    %v483 = vrot.slane %v469, %v482
    %v484 = vcombine.low %v308, %v312
    %v485 = vcombine.high %v308, %v312
    %v487 = vunpack.c.l.s4 1983009808
    %v488 = vunpack.c.0.s8 %v487
    %v489 = vlaneseq
    %v490 = vshrl.u32 %v489, 7
    %v491 = vsub.s32 %v488, %v490
    %v492 = vrot.slane %v484, %v491
    %v494 = vunpack.c.l.s4 1983009808
    %v495 = vunpack.c.0.s8 %v494
    %v496 = vlaneseq
    %v497 = vshrl.u32 %v496, 7
    %v498 = vsub.s32 %v495, %v497
    %v499 = vrot.slane %v485, %v498
    %v500 = vcombine.low %v310, %v314
    %v501 = vcombine.high %v310, %v314
    %v503 = vunpack.c.l.s4 1983009808
    %v504 = vunpack.c.0.s8 %v503
    %v505 = vlaneseq
    %v506 = vshrl.u32 %v505, 7
    %v507 = vsub.s32 %v504, %v506
    %v508 = vrot.slane %v500, %v507
    %v510 = vunpack.c.l.s4 1983009808
    %v511 = vunpack.c.0.s8 %v510
    %v512 = vlaneseq
    %v513 = vshrl.u32 %v512, 7
    %v514 = vsub.s32 %v511, %v513
    %v515 = vrot.slane %v501, %v514
    %v516 = vcombine.low %v460, %v476
    %v517 = vcombine.high %v460, %v476
    %v519 = vunpack.c.l.s4 1934713408
    %v520 = vunpack.c.0.s8 %v519
    %v521 = vlaneseq
    %v522 = vshrl.u32 %v521, 7
    %v523 = vsub.s32 %v520, %v522
    %v524 = vrot.slane %v516, %v523
    %v526 = vunpack.c.l.s4 1934713408
    %v527 = vunpack.c.0.s8 %v526
    %v528 = vlaneseq
    %v529 = vshrl.u32 %v528, 7
    %v530 = vsub.s32 %v527, %v529
    %v531 = vrot.slane %v517, %v530
    %v532 = vcombine.low %v467, %v483
    %v533 = vcombine.high %v467, %v483
    %v535 = vunpack.c.l.s4 1934713408
    %v536 = vunpack.c.0.s8 %v535
    %v537 = vlaneseq
    %v538 = vshrl.u32 %v537, 7
    %v539 = vsub.s32 %v536, %v538
    %v540 = vrot.slane %v532, %v539
    %v542 = vunpack.c.l.s4 1934713408
    %v543 = vunpack.c.0.s8 %v542
    %v544 = vlaneseq
    %v545 = vshrl.u32 %v544, 7
    %v546 = vsub.s32 %v543, %v545
    %v547 = vrot.slane %v533, %v546
    %v548 = vcombine.low %v492, %v508
    %v549 = vcombine.high %v492, %v508
    %v551 = vunpack.c.l.s4 1934713408
    %v552 = vunpack.c.0.s8 %v551
    %v553 = vlaneseq
    %v554 = vshrl.u32 %v553, 7
    %v555 = vsub.s32 %v552, %v554
    %v556 = vrot.slane %v548, %v555
    %v558 = vunpack.c.l.s4 1934713408
    %v559 = vunpack.c.0.s8 %v558
    %v560 = vlaneseq
    %v561 = vshrl.u32 %v560, 7
    %v562 = vsub.s32 %v559, %v561
    %v563 = vrot.slane %v549, %v562
    %v564 = vcombine.low %v499, %v515
    %v565 = vcombine.high %v499, %v515
    %v567 = vunpack.c.l.s4 1934713408
    %v568 = vunpack.c.0.s8 %v567
    %v569 = vlaneseq
    %v570 = vshrl.u32 %v569, 7
    %v571 = vsub.s32 %v568, %v570
    %v572 = vrot.slane %v564, %v571
    %v574 = vunpack.c.l.s4 1934713408
    %v575 = vunpack.c.0.s8 %v574
    %v576 = vlaneseq
    %v577 = vshrl.u32 %v576, 7
    %v578 = vsub.s32 %v575, %v577
    %v579 = vrot.slane %v565, %v578
    %v580 = vcombine.low %v524, %v556
    %v581 = vcombine.high %v524, %v556
    %v582 = vcombine.low %v531, %v563
    %v583 = vcombine.high %v531, %v563
    %v584 = vcombine.low %v540, %v572
    %v585 = vcombine.high %v540, %v572
    %v586 = vcombine.low %v547, %v579
    %v587 = vcombine.high %v547, %v579
    %v588 = vcombine.low %v285, %v289
    %v589 = vcombine.high %v285, %v289
    %v591 = vunpack.c.l.s4 1983009808
    %v592 = vunpack.c.0.s8 %v591
    %v593 = vlaneseq
    %v594 = vshrl.u32 %v593, 7
    %v595 = vsub.s32 %v592, %v594
    %v596 = vrot.slane %v588, %v595
    %v598 = vunpack.c.l.s4 1983009808
    %v599 = vunpack.c.0.s8 %v598
    %v600 = vlaneseq
    %v601 = vshrl.u32 %v600, 7
    %v602 = vsub.s32 %v599, %v601
    %v603 = vrot.slane %v589, %v602
    %v604 = vcombine.low %v287, %v291
    %v605 = vcombine.high %v287, %v291
    %v607 = vunpack.c.l.s4 1983009808
    %v608 = vunpack.c.0.s8 %v607
    %v609 = vlaneseq
    %v610 = vshrl.u32 %v609, 7
    %v611 = vsub.s32 %v608, %v610
    %v612 = vrot.slane %v604, %v611
    %v614 = vunpack.c.l.s4 1983009808
    %v615 = vunpack.c.0.s8 %v614
    %v616 = vlaneseq
    %v617 = vshrl.u32 %v616, 7
    %v618 = vsub.s32 %v615, %v617
    %v619 = vrot.slane %v605, %v618
    %v620 = vcombine.low %v293, %v297
    %v621 = vcombine.high %v293, %v297
    %v623 = vunpack.c.l.s4 1983009808
    %v624 = vunpack.c.0.s8 %v623
    %v625 = vlaneseq
    %v626 = vshrl.u32 %v625, 7
    %v627 = vsub.s32 %v624, %v626
    %v628 = vrot.slane %v620, %v627
    %v630 = vunpack.c.l.s4 1983009808
    %v631 = vunpack.c.0.s8 %v630
    %v632 = vlaneseq
    %v633 = vshrl.u32 %v632, 7
    %v634 = vsub.s32 %v631, %v633
    %v635 = vrot.slane %v621, %v634
    %v636 = vcombine.low %v295, %v299
    %v637 = vcombine.high %v295, %v299
    %v639 = vunpack.c.l.s4 1983009808
    %v640 = vunpack.c.0.s8 %v639
    %v641 = vlaneseq
    %v642 = vshrl.u32 %v641, 7
    %v643 = vsub.s32 %v640, %v642
    %v644 = vrot.slane %v636, %v643
    %v646 = vunpack.c.l.s4 1983009808
    %v647 = vunpack.c.0.s8 %v646
    %v648 = vlaneseq
    %v649 = vshrl.u32 %v648, 7
    %v650 = vsub.s32 %v647, %v649
    %v651 = vrot.slane %v637, %v650
    %v652 = vcombine.low %v596, %v612
    %v653 = vcombine.high %v596, %v612
    %v655 = vunpack.c.l.s4 1934713408
    %v656 = vunpack.c.0.s8 %v655
    %v657 = vlaneseq
    %v658 = vshrl.u32 %v657, 7
    %v659 = vsub.s32 %v656, %v658
    %v660 = vrot.slane %v652, %v659
    %v662 = vunpack.c.l.s4 1934713408
    %v663 = vunpack.c.0.s8 %v662
    %v664 = vlaneseq
    %v665 = vshrl.u32 %v664, 7
    %v666 = vsub.s32 %v663, %v665
    %v667 = vrot.slane %v653, %v666
    %v668 = vcombine.low %v603, %v619
    %v669 = vcombine.high %v603, %v619
    %v671 = vunpack.c.l.s4 1934713408
    %v672 = vunpack.c.0.s8 %v671
    %v673 = vlaneseq
    %v674 = vshrl.u32 %v673, 7
    %v675 = vsub.s32 %v672, %v674
    %v676 = vrot.slane %v668, %v675
    %v678 = vunpack.c.l.s4 1934713408
    %v679 = vunpack.c.0.s8 %v678
    %v680 = vlaneseq
    %v681 = vshrl.u32 %v680, 7
    %v682 = vsub.s32 %v679, %v681
    %v683 = vrot.slane %v669, %v682
    %v684 = vcombine.low %v628, %v644
    %v685 = vcombine.high %v628, %v644
    %v687 = vunpack.c.l.s4 1934713408
    %v688 = vunpack.c.0.s8 %v687
    %v689 = vlaneseq
    %v690 = vshrl.u32 %v689, 7
    %v691 = vsub.s32 %v688, %v690
    %v692 = vrot.slane %v684, %v691
    %v694 = vunpack.c.l.s4 1934713408
    %v695 = vunpack.c.0.s8 %v694
    %v696 = vlaneseq
    %v697 = vshrl.u32 %v696, 7
    %v698 = vsub.s32 %v695, %v697
    %v699 = vrot.slane %v685, %v698
    %v700 = vcombine.low %v635, %v651
    %v701 = vcombine.high %v635, %v651
    %v703 = vunpack.c.l.s4 1934713408
    %v704 = vunpack.c.0.s8 %v703
    %v705 = vlaneseq
    %v706 = vshrl.u32 %v705, 7
    %v707 = vsub.s32 %v704, %v706
    %v708 = vrot.slane %v700, %v707
    %v710 = vunpack.c.l.s4 1934713408
    %v711 = vunpack.c.0.s8 %v710
    %v712 = vlaneseq
    %v713 = vshrl.u32 %v712, 7
    %v714 = vsub.s32 %v711, %v713
    %v715 = vrot.slane %v701, %v714
    %v716 = vcombine.low %v660, %v692
    %v717 = vcombine.high %v660, %v692
    %v718 = vcombine.low %v667, %v699
    %v719 = vcombine.high %v667, %v699
    %v720 = vcombine.low %v676, %v708
    %v721 = vcombine.high %v676, %v708
    %v722 = vcombine.low %v683, %v715
    %v723 = vcombine.high %v683, %v715
    %v724 = vcombine.low %v301, %v305
    %v725 = vcombine.high %v301, %v305
    %v727 = vunpack.c.l.s4 1983009808
    %v728 = vunpack.c.0.s8 %v727
    %v729 = vlaneseq
    %v730 = vshrl.u32 %v729, 7
    %v731 = vsub.s32 %v728, %v730
    %v732 = vrot.slane %v724, %v731
    %v734 = vunpack.c.l.s4 1983009808
    %v735 = vunpack.c.0.s8 %v734
    %v736 = vlaneseq
    %v737 = vshrl.u32 %v736, 7
    %v738 = vsub.s32 %v735, %v737
    %v739 = vrot.slane %v725, %v738
    %v740 = vcombine.low %v303, %v307
    %v741 = vcombine.high %v303, %v307
    %v743 = vunpack.c.l.s4 1983009808
    %v744 = vunpack.c.0.s8 %v743
    %v745 = vlaneseq
    %v746 = vshrl.u32 %v745, 7
    %v747 = vsub.s32 %v744, %v746
    %v748 = vrot.slane %v740, %v747
    %v750 = vunpack.c.l.s4 1983009808
    %v751 = vunpack.c.0.s8 %v750
    %v752 = vlaneseq
    %v753 = vshrl.u32 %v752, 7
    %v754 = vsub.s32 %v751, %v753
    %v755 = vrot.slane %v741, %v754
    %v756 = vcombine.low %v309, %v313
    %v757 = vcombine.high %v309, %v313
    %v759 = vunpack.c.l.s4 1983009808
    %v760 = vunpack.c.0.s8 %v759
    %v761 = vlaneseq
    %v762 = vshrl.u32 %v761, 7
    %v763 = vsub.s32 %v760, %v762
    %v764 = vrot.slane %v756, %v763
    %v766 = vunpack.c.l.s4 1983009808
    %v767 = vunpack.c.0.s8 %v766
    %v768 = vlaneseq
    %v769 = vshrl.u32 %v768, 7
    %v770 = vsub.s32 %v767, %v769
    %v771 = vrot.slane %v757, %v770
    %v772 = vcombine.low %v311, %v315
    %v773 = vcombine.high %v311, %v315
    %v775 = vunpack.c.l.s4 1983009808
    %v776 = vunpack.c.0.s8 %v775
    %v777 = vlaneseq
    %v778 = vshrl.u32 %v777, 7
    %v779 = vsub.s32 %v776, %v778
    %v780 = vrot.slane %v772, %v779
    %v782 = vunpack.c.l.s4 1983009808
    %v783 = vunpack.c.0.s8 %v782
    %v784 = vlaneseq
    %v785 = vshrl.u32 %v784, 7
    %v786 = vsub.s32 %v783, %v785
    %v787 = vrot.slane %v773, %v786
    %v788 = vcombine.low %v732, %v748
    %v789 = vcombine.high %v732, %v748
    %v791 = vunpack.c.l.s4 1934713408
    %v792 = vunpack.c.0.s8 %v791
    %v793 = vlaneseq
    %v794 = vshrl.u32 %v793, 7
    %v795 = vsub.s32 %v792, %v794
    %v796 = vrot.slane %v788, %v795
    %v798 = vunpack.c.l.s4 1934713408
    %v799 = vunpack.c.0.s8 %v798
    %v800 = vlaneseq
    %v801 = vshrl.u32 %v800, 7
    %v802 = vsub.s32 %v799, %v801
    %v803 = vrot.slane %v789, %v802
    %v804 = vcombine.low %v739, %v755
    %v805 = vcombine.high %v739, %v755
    %v807 = vunpack.c.l.s4 1934713408
    %v808 = vunpack.c.0.s8 %v807
    %v809 = vlaneseq
    %v810 = vshrl.u32 %v809, 7
    %v811 = vsub.s32 %v808, %v810
    %v812 = vrot.slane %v804, %v811
    %v814 = vunpack.c.l.s4 1934713408
    %v815 = vunpack.c.0.s8 %v814
    %v816 = vlaneseq
    %v817 = vshrl.u32 %v816, 7
    %v818 = vsub.s32 %v815, %v817
    %v819 = vrot.slane %v805, %v818
    %v820 = vcombine.low %v764, %v780
    %v821 = vcombine.high %v764, %v780
    %v823 = vunpack.c.l.s4 1934713408
    %v824 = vunpack.c.0.s8 %v823
    %v825 = vlaneseq
    %v826 = vshrl.u32 %v825, 7
    %v827 = vsub.s32 %v824, %v826
    %v828 = vrot.slane %v820, %v827
    %v830 = vunpack.c.l.s4 1934713408
    %v831 = vunpack.c.0.s8 %v830
    %v832 = vlaneseq
    %v833 = vshrl.u32 %v832, 7
    %v834 = vsub.s32 %v831, %v833
    %v835 = vrot.slane %v821, %v834
    %v836 = vcombine.low %v771, %v787
    %v837 = vcombine.high %v771, %v787
    %v839 = vunpack.c.l.s4 1934713408
    %v840 = vunpack.c.0.s8 %v839
    %v841 = vlaneseq
    %v842 = vshrl.u32 %v841, 7
    %v843 = vsub.s32 %v840, %v842
    %v844 = vrot.slane %v836, %v843
    %v846 = vunpack.c.l.s4 1934713408
    %v847 = vunpack.c.0.s8 %v846
    %v848 = vlaneseq
    %v849 = vshrl.u32 %v848, 7
    %v850 = vsub.s32 %v847, %v849
    %v851 = vrot.slane %v837, %v850
    %v852 = vcombine.low %v796, %v828
    %v853 = vcombine.high %v796, %v828
    %v854 = vcombine.low %v803, %v835
    %v855 = vcombine.high %v803, %v835
    %v856 = vcombine.low %v812, %v844
    %v857 = vcombine.high %v812, %v844
    %v858 = vcombine.low %v819, %v851
    %v859 = vcombine.high %v819, %v851
    %862 = vrot.lane.b32.xlu0 %v445, 16
    %v863 = vpop.permute.xlu0 %862
    %864 = vrot.lane.b32.xlu0 %v581, 16
    %v865 = vpop.permute.xlu0 %864
    %870 = vrot.lane.b32.xlu0 %v446, 32
    %v871 = vpop.permute.xlu0 %870
    %872 = vrot.lane.b32.xlu0 %v582, 32
    %v873 = vpop.permute.xlu0 %872
    %878 = vrot.lane.b32.xlu0 %v447, 48
    %v879 = vpop.permute.xlu0 %878
    %880 = vrot.lane.b32.xlu0 %v583, 48
    %v881 = vpop.permute.xlu0 %880
    %886 = vrot.lane.b32.xlu0 %v448, 64
    %v887 = vpop.permute.xlu0 %886
    %888 = vrot.lane.b32.xlu0 %v584, 64
    %v889 = vpop.permute.xlu0 %888
    %894 = vrot.lane.b32.xlu0 %v449, 80
    %v895 = vpop.permute.xlu0 %894
    %896 = vrot.lane.b32.xlu0 %v585, 80
    %v897 = vpop.permute.xlu0 %896
    %902 = vrot.lane.b32.xlu0 %v450, 96
    %v903 = vpop.permute.xlu0 %902
    %904 = vrot.lane.b32.xlu0 %v586, 96
    %v905 = vpop.permute.xlu0 %904
    %910 = vrot.lane.b32.xlu0 %v451, 112
    %v911 = vpop.permute.xlu0 %910
    %912 = vrot.lane.b32.xlu0 %v587, 112
    %v913 = vpop.permute.xlu0 %912
    %918 = vrot.lane.b32.xlu0 %v717, 16
    %v919 = vpop.permute.xlu0 %918
    %920 = vrot.lane.b32.xlu0 %v853, 16
    %v921 = vpop.permute.xlu0 %920
    %926 = vrot.lane.b32.xlu0 %v718, 32
    %v927 = vpop.permute.xlu0 %926
    %928 = vrot.lane.b32.xlu0 %v854, 32
    %v929 = vpop.permute.xlu0 %928
    %934 = vrot.lane.b32.xlu0 %v719, 48
    %v935 = vpop.permute.xlu0 %934
    %936 = vrot.lane.b32.xlu0 %v855, 48
    %v937 = vpop.permute.xlu0 %936
    %942 = vrot.lane.b32.xlu0 %v720, 64
    %v943 = vpop.permute.xlu0 %942
    %944 = vrot.lane.b32.xlu0 %v856, 64
    %v945 = vpop.permute.xlu0 %944
    %950 = vrot.lane.b32.xlu0 %v721, 80
    %v951 = vpop.permute.xlu0 %950
    %952 = vrot.lane.b32.xlu0 %v857, 80
    %v953 = vpop.permute.xlu0 %952
    %958 = vrot.lane.b32.xlu0 %v722, 96
    %v959 = vpop.permute.xlu0 %958
    %960 = vrot.lane.b32.xlu0 %v858, 96
    %v961 = vpop.permute.xlu0 %960
    %966 = vrot.lane.b32.xlu0 %v723, 112
    %v967 = vpop.permute.xlu0 %966
    %968 = vrot.lane.b32.xlu0 %v859, 112
    %v969 = vpop.permute.xlu0 %968
    %vm972 = vcmask 130048
    %v973 = vsel %vm972, %v444, %v863
    %v974 = vsel %vm972, %v580, %v865
    %vm975 = vcmask 261120
    %v976 = vsel %vm975, %v973, %v871
    %v977 = vsel %vm975, %v974, %v873
    %vm978 = vcmask 392192
    %v979 = vsel %vm978, %v976, %v879
    %v980 = vsel %vm978, %v977, %v881
    %vm981 = vcmask 523264
    %v982 = vsel %vm981, %v979, %v887
    %v983 = vsel %vm981, %v980, %v889
    %vm984 = vcmask 654336
    %v985 = vsel %vm984, %v982, %v895
    %v986 = vsel %vm984, %v983, %v897
    %vm987 = vcmask 785408
    %v988 = vsel %vm987, %v985, %v903
    %v989 = vsel %vm987, %v986, %v905
    %vm990 = vcmask 916480
    %v991 = vsel %vm990, %v988, %v911
    %v992 = vsel %vm990, %v989, %v913
    %v993 = vsel %vm972, %v716, %v919
    %v994 = vsel %vm972, %v852, %v921
    %v995 = vsel %vm975, %v993, %v927
    %v996 = vsel %vm975, %v994, %v929
    %v997 = vsel %vm978, %v995, %v935
    %v998 = vsel %vm978, %v996, %v937
    %v999 = vsel %vm981, %v997, %v943
    %v1000 = vsel %vm981, %v998, %v945
    %v1001 = vsel %vm984, %v999, %v951
    %v1002 = vsel %vm984, %v1000, %v953
    %v1003 = vsel %vm987, %v1001, %v959
    %v1004 = vsel %vm987, %v1002, %v961
    %v1005 = vsel %vm990, %v1003, %v967
    %v1006 = vsel %vm990, %v1004, %v969
    %v1007 = vld [vmem:[%s1] sm:$0xff]
    %v1008 = vld [vmem:[%s1 + $0x8] sm:$0xff]
    %v1009 = vld [vmem:[%s1 + $0x10] sm:$0xff]
    %v1010 = vld [vmem:[%s1 + $0x18] sm:$0xff]
    %v1011 = vld [vmem:[%s1 + $0x20] sm:$0xff]
    %v1012 = vld [vmem:[%s1 + $0x28] sm:$0xff]
    %v1013 = vld [vmem:[%s1 + $0x30] sm:$0xff]
    %v1014 = vld [vmem:[%s1 + $0x38] sm:$0xff]
    %v1015 = vld [vmem:[%s1 + $0x40] sm:$0xff]
    %v1016 = vld [vmem:[%s1 + $0x48] sm:$0xff]
    %v1017 = vld [vmem:[%s1 + $0x50] sm:$0xff]
    %v1018 = vld [vmem:[%s1 + $0x58] sm:$0xff]
    %v1019 = vld [vmem:[%s1 + $0x60] sm:$0xff]
    %v1020 = vld [vmem:[%s1 + $0x68] sm:$0xff]
    %v1021 = vld [vmem:[%s1 + $0x70] sm:$0xff]
    %v1022 = vld [vmem:[%s1 + $0x78] sm:$0xff]
    %v1023 = vld [vmem:[%s1 + $0x80] sm:$0xff]
    %v1024 = vld [vmem:[%s1 + $0x88] sm:$0xff]
    %v1025 = vld [vmem:[%s1 + $0x90] sm:$0xff]
    %v1026 = vld [vmem:[%s1 + $0x98] sm:$0xff]
    %v1027 = vld [vmem:[%s1 + $0xa0] sm:$0xff]
    %v1028 = vld [vmem:[%s1 + $0xa8] sm:$0xff]
    %v1029 = vld [vmem:[%s1 + $0xb0] sm:$0xff]
    %v1030 = vld [vmem:[%s1 + $0xb8] sm:$0xff]
    %v1031 = vld [vmem:[%s1 + $0xc0] sm:$0xff]
    %v1032 = vld [vmem:[%s1 + $0xc8] sm:$0xff]
    %v1033 = vld [vmem:[%s1 + $0xd0] sm:$0xff]
    %v1034 = vld [vmem:[%s1 + $0xd8] sm:$0xff]
    %v1035 = vld [vmem:[%s1 + $0xe0] sm:$0xff]
    %v1036 = vld [vmem:[%s1 + $0xe8] sm:$0xff]
    %v1037 = vld [vmem:[%s1 + $0xf0] sm:$0xff]
    %v1038 = vld [vmem:[%s1 + $0xf8] sm:$0xff]
    %1039 = vmatprep.subr.mxu0 0.0
    %1040 = vmatpush1.msra.mxu0 %v1007
    %1041 = vmatprep.subr.mxu0 0.0
    %1042 = vmatpush1.msra.mxu0 %v1008
    %1043 = vmatprep.subr.mxu0 0.0
    %1044 = vmatpush1.msra.mxu0 %v1009
    %1045 = vmatprep.subr.mxu0 0.0
    %1046 = vmatpush1.msra.mxu0 %v1010
    %1047 = vmatprep.subr.mxu0 0.0
    %1048 = vmatpush1.msra.mxu0 %v1011
    %1049 = vmatprep.subr.mxu0 0.0
    %1050 = vmatpush1.msra.mxu0 %v1012
    %1051 = vmatprep.subr.mxu0 0.0
    %1052 = vmatpush1.msra.mxu0 %v1013
    %1053 = vmatprep.subr.mxu0 0.0
    %1054 = vmatpush1.msra.mxu0 %v1014
    %1055 = vmatprep.subr.mxu0 0.0
    %1056 = vmatpush1.msra.mxu0 %v1015
    %1057 = vmatprep.subr.mxu0 0.0
    %1058 = vmatpush1.msra.mxu0 %v1016
    %1059 = vmatprep.subr.mxu0 0.0
    %1060 = vmatpush1.msra.mxu0 %v1017
    %1061 = vmatprep.subr.mxu0 0.0
    %1062 = vmatpush1.msra.mxu0 %v1018
    %1063 = vmatprep.subr.mxu0 0.0
    %1064 = vmatpush1.msra.mxu0 %v1019
    %1065 = vmatprep.subr.mxu0 0.0
    %1066 = vmatpush1.msra.mxu0 %v1020
    %1067 = vmatprep.subr.mxu0 0.0
    %1068 = vmatpush1.msra.mxu0 %v1021
    %1069 = vmatprep.subr.mxu0 0.0
    %1070 = vmatpush1.msra.mxu0 %v1022
    %1071 = vmatprep.subr.mxu0 0.0
    %1072 = vmatpush1.msra.mxu0 %v1023
    %1073 = vmatprep.subr.mxu0 0.0
    %1074 = vmatpush1.msra.mxu0 %v1024
    %1075 = vmatprep.subr.mxu0 0.0
    %1076 = vmatpush1.msra.mxu0 %v1025
    %1077 = vmatprep.subr.mxu0 0.0
    %1078 = vmatpush1.msra.mxu0 %v1026
    %1079 = vmatprep.subr.mxu0 0.0
    %1080 = vmatpush1.msra.mxu0 %v1027
    %1081 = vmatprep.subr.mxu0 0.0
    %1082 = vmatpush1.msra.mxu0 %v1028
    %1083 = vmatprep.subr.mxu0 0.0
    %1084 = vmatpush1.msra.mxu0 %v1029
    %1085 = vmatprep.subr.mxu0 0.0
    %1086 = vmatpush1.msra.mxu0 %v1030
    %1087 = vmatprep.subr.mxu0 0.0
    %1088 = vmatpush1.msra.mxu0 %v1031
    %1089 = vmatprep.subr.mxu0 0.0
    %1090 = vmatpush1.msra.mxu0 %v1032
    %1091 = vmatprep.subr.mxu0 0.0
    %1092 = vmatpush1.msra.mxu0 %v1033
    %1093 = vmatprep.subr.mxu0 0.0
    %1094 = vmatpush1.msra.mxu0 %v1034
    %1095 = vmatprep.subr.mxu0 0.0
    %1096 = vmatpush1.msra.mxu0 %v1035
    %1097 = vmatprep.subr.mxu0 0.0
    %1098 = vmatpush1.msra.mxu0 %v1036
    %1099 = vmatprep.subr.mxu0 0.0
    %1100 = vmatpush1.msra.mxu0 %v1037
    %1101 = vmatprep.subr.mxu0 0.0
    %1102 = vmatpush1.msra.mxu0 %v1038
    %1103 = vmatprep.mubr.f32.mxu0 %v1005
    %1104 = vmatmul.mubr.f32.gmra.mrb[0].mxu0 %v991
    %v1105 = vpop.f32.mrb[0].mxu0
    %v1106 = vadd.f32 0.0, %v1105
    %v1107 = vpop.f32.mrb[0].mxu0
    %1108 = vmatprep.mubr.f32.mxu0 %v1006
    %1109 = vmatmul.mubr.f32.gmra.mrb[0].mxu0 %v992
    %v1110 = vpop.f32.mrb[0].mxu0
    %v1111 = vadd.f32 0.0, %v1110
    %v1112 = vpop.f32.mrb[0].mxu0
    %1113 = vdwg.mxu0
    %1114 = vst.msk [vmem:[#allocation2] sm:$0xff] %vm972, %v1106
    %1115 = vst.msk [vmem:[#allocation2 + $0x8] sm:$0xff] %vm972, %v1111
    // Predicated region
    $region10: #{tpu_custom_call.1} parent=1 // pred_check
      _
    $region11: #{tpu_custom_call.1} parent=1 // pred_check_branch
      %1117 = sbr.rel (0) target = $region13
    $region12: #{tpu_custom_call.1} parent=1 // pred_region
      %s1119 = ssub.s32 256, 256
      %1120 = vsyncadd [#allocation3], %s1119
      %s1121 = sshll.u32 [#allocation2], 4
      %s1122 = int_to_ptr.vmem [resolvable:$true] %s1121
      %1127 = dma.vmem_to_hbm [thread:$0]  %s1122, 256, %s2, [#allocation3], 128, 128, 8
    $region13: #{tpu_custom_call.1} parent=1 // pred_fallthru
      _
    // Predicated region
    $region14: #{tpu_custom_call.1} parent=1 // pred_check
      _
    $region15: #{tpu_custom_call.1} parent=1 // pred_check_branch
      %1129 = sbr.rel (0) target = $region17
    $region16: #{tpu_custom_call.1} parent=1 // pred_region
      %1130 = dma.done [#allocation3], 256
    $region17: #{tpu_custom_call.1} parent=1 // pred_fallthru
      _
    %1131 = vsyncpa [#allocation3], 1

</llo_original>
